<compile_context>
chip_gen: v6e
topology: v6e:2x2x1
jax: 0.10.0
libtpu: 0.0.40
codegen_flags: <defaults>
</compile_context>

<pallas_src>
import jax
import jax.numpy as jnp
from jax.experimental import pallas as pl
from jax.experimental.pallas import tpu as pltpu

LANE = 128      # last-dim (lane) tiling on TPU
SUBLANE = 8     # second-to-last-dim (sublane) tiling on TPU
C3P = SUBLANE   # padded output channels (3 real) in the transposed last layer


def _round_up(x, m):
    return ((x + m - 1) // m) * m


# ----------------------------- Pallas kernel ------------------------------ #
def _mlp_adj_kernel(x_ref, g_ref, w1g_ref, w1x_ref, b1_ref,
                    w2_ref, b2_ref, w3_ref, b3_ref, w4t_ref, b4t_ref, o_ref):
    """One (patch, batch, row-tile) step of the per-patch mlpAdj.

    x_ref  : (1, NLATP)        latent code of this batch element
    g_ref  : (RT, DIMP)        grid rows of this tile (pad lanes are 0)
    w*_ref : per-patch padded weights / biases
    o_ref  : (8, RT)           transposed output (rows on lanes, 3 real chans)
    """
    f32 = jnp.float32

    # Layer 1: [grid ; latent] @ W1 + b1, with the concat folded into a
    # row-matmul (grid part) plus a per-step broadcast vector (latent part).
    lat = jnp.dot(x_ref[...], w1x_ref[...], preferred_element_type=f32)   # (1, C0P)
    h = jnp.dot(g_ref[...], w1g_ref[...], preferred_element_type=f32)     # (RT, C0P)
    h = jnp.maximum(h + lat + b1_ref[...], 0.0)

    h = jnp.maximum(jnp.dot(h, w2_ref[...], preferred_element_type=f32)
                    + b2_ref[...], 0.0)                                    # (RT, C1P)
    h = jnp.maximum(jnp.dot(h, w3_ref[...], preferred_element_type=f32)
                    + b3_ref[...], 0.0)                                    # (RT, C2P)

    # Transposed final layer: (8, C2P) x (RT, C2P) contracted over C2P -> (8, RT).
    z = jax.lax.dot_general(w4t_ref[...], h, (((1,), (1,)), ((), ())),
                            preferred_element_type=f32)
    o_ref[...] = jnp.tanh(z + b4t_ref[...])


def point_trans_mlp_adj_decoder_pallas(xp, gp, pp, *, row_tile, npp_pad):
    """xp: (B, 1, NLATP) padded latents; gp: (npatch, npp_pad, DIMP) padded grids;
    pp: dict of padded per-patch weights/biases.  Returns (npatch, B, 8, npp_pad)."""
    B = xp.shape[0]
    npatch, _, dimp = gp.shape
    nlatp = xp.shape[-1]
    n_t = npp_pad // row_tile

    def wspec(arr):
        # Per-patch weight/bias block; constant over (b, t) so it is fetched
        # once per patch (patch is the outermost, slowest-varying grid axis).
        ndim = arr.ndim
        return pl.BlockSpec((None,) + arr.shape[1:],
                            lambda p, b, t, _n=ndim: (p,) + (0,) * (_n - 1))

    return pl.pallas_call(
        _mlp_adj_kernel,
        out_shape=jax.ShapeDtypeStruct((npatch, B, C3P, npp_pad), jnp.float32),
        grid=(npatch, B, n_t),
        in_specs=[
            pl.BlockSpec((None, 1, nlatp), lambda p, b, t: (b, 0, 0)),        # x
            pl.BlockSpec((None, row_tile, dimp), lambda p, b, t: (p, t, 0)),  # grid
            wspec(pp["w1g"]), wspec(pp["w1x"]), wspec(pp["b1"]),
            wspec(pp["w2"]), wspec(pp["b2"]),
            wspec(pp["w3"]), wspec(pp["b3"]),
            wspec(pp["w4t"]), wspec(pp["b4t"]),
        ],
        out_specs=pl.BlockSpec((None, None, C3P, row_tile),
                               lambda p, b, t: (p, b, 0, t)),
        compiler_params=pltpu.CompilerParams(
            dimension_semantics=("parallel", "parallel", "parallel")),
    )(xp, gp, pp["w1g"], pp["w1x"], pp["b1"], pp["w2"], pp["b2"],
      pp["w3"], pp["b3"], pp["w4t"], pp["b4t"])


# ----------------------------- Parameter setup ----------------------------- #
def _uniform(key, shape, bound):
    return jax.random.uniform(key, shape, jnp.float32, -bound, bound)


def init_decoder_params(key, npatch, c0):
    """Per-patch mlpAdj params (eval-mode BatchNorm folded: gamma=1, beta=0,
    mean=0, var=1, eps=1e-5).  Weights stored as (C_in, C_out) for x @ W."""
    c1, c2, c3 = c0 // 2, c0 // 4, 3
    bn_scale = 1.0 / jnp.sqrt(1.0 + 1e-5)

    acc = {k: [] for k in ("w1", "b1", "w2", "b2", "w3", "b3", "w4", "b4")}
    for _ in range(npatch):
        key, *ks = jax.random.split(key, 9)
        # PyTorch Conv1d default init bound = 1/sqrt(fan_in)
        w1 = _uniform(ks[0], (c0, c0), 1.0 / jnp.sqrt(c0))
        b1 = _uniform(ks[1], (c0,),    1.0 / jnp.sqrt(c0))
        w2 = _uniform(ks[2], (c1, c0), 1.0 / jnp.sqrt(c0))
        b2 = _uniform(ks[3], (c1,),    1.0 / jnp.sqrt(c0))
        w3 = _uniform(ks[4], (c2, c1), 1.0 / jnp.sqrt(c1))
        b3 = _uniform(ks[5], (c2,),    1.0 / jnp.sqrt(c1))
        w4 = _uniform(ks[6], (c3, c2), 1.0 / jnp.sqrt(c2))
        b4 = _uniform(ks[7], (c3,),    1.0 / jnp.sqrt(c2))
        acc["w1"].append((w1 * bn_scale).T); acc["b1"].append(b1 * bn_scale)
        acc["w2"].append((w2 * bn_scale).T); acc["b2"].append(b2 * bn_scale)
        acc["w3"].append((w3 * bn_scale).T); acc["b3"].append(b3 * bn_scale)
        acc["w4"].append(w4.T);              acc["b4"].append(b4)
    return {k: jnp.stack(v, 0) for k, v in acc.items()}, key


def init_grid_params(key, npatch, dim, npp):
    """patch%d parameters: uniform(0,1), rows >= 2 zeroed."""
    grids = []
    for _ in range(npatch):
        key, k = jax.random.split(key)
        g = jax.random.uniform(k, (1, dim, npp), jnp.float32, 0.0, 1.0)
        g = g.at[:, 2:, :].set(0.0)
        grids.append(g)
    return grids, key


def pad_params(params, dim):
    """Split W1 into grid/latent halves, transpose W4, zero-pad all channel
    dims to TPU-friendly sizes (128 lanes; 8 output sublanes for layer 4)."""
    _, c0, _ = params["w1"].shape
    c1 = params["w2"].shape[2]
    c2 = params["w3"].shape[2]
    c3 = params["w4"].shape[2]
    nlatent = c0 - dim
    dimp = _round_up(dim, SUBLANE)
    nlatp = _round_up(nlatent, LANE)
    c0p, c1p, c2p = (_round_up(c, LANE) for c in (c0, c1, c2))

    w1g = params["w1"][:, :dim, :]   # (P, dim,  c0)
    w1x = params["w1"][:, dim:, :]   # (P, nlat, c0)
    w4t = jnp.transpose(params["w4"], (0, 2, 1))   # (P, 3, c2)

    return {
        "w1g": jnp.pad(w1g, ((0, 0), (0, dimp - dim),      (0, c0p - c0))),
        "w1x": jnp.pad(w1x, ((0, 0), (0, nlatp - nlatent), (0, c0p - c0))),
        "b1":  jnp.pad(params["b1"], ((0, 0), (0, c0p - c0)))[:, None, :],
        "w2":  jnp.pad(params["w2"], ((0, 0), (0, c0p - c0), (0, c1p - c1))),
        "b2":  jnp.pad(params["b2"], ((0, 0), (0, c1p - c1)))[:, None, :],
        "w3":  jnp.pad(params["w3"], ((0, 0), (0, c1p - c1), (0, c2p - c2))),
        "b3":  jnp.pad(params["b3"], ((0, 0), (0, c2p - c2)))[:, None, :],
        "w4t": jnp.pad(w4t, ((0, 0), (0, C3P - c3), (0, c2p - c2))),
        "b4t": jnp.pad(params["b4"], ((0, 0), (0, C3P - c3)))[:, :, None],
    }


# ------------------------------- Forward glue ------------------------------ #
def forward(x, grids, params, npatch, dim, nlatent, npp, *, row_tile=512):
    """Reproduces PointTransMLPAdjDecoder.forward.
    x: (B, nlatent).  Returns ((B, npatch*npp, 3), patches list of (npp, dim)).
    row_tile: points per grid step (use 1024-2048 on v5e/v6e, <=512 on v7x)."""
    B = x.shape[0]

    patches = [jnp.transpose(g[0], (1, 0)) for g in grids]          # (npp, dim)

    # Row / channel padding for the tiny kernel inputs.
    dimp = _round_up(dim, SUBLANE)
    nlatp = _round_up(nlatent, LANE)
    if npp <= row_tile:
        npp_pad = _round_up(npp, SUBLANE)
        rt = npp_pad
    else:
        assert row_tile % LANE == 0, "row_tile must be a multiple of 128"
        npp_pad = _round_up(npp, row_tile)
        rt = row_tile

    g_stack = jnp.stack(patches, axis=0)                            # (P, npp, dim)
    gp = jnp.pad(g_stack, ((0, 0), (0, npp_pad - npp), (0, dimp - dim)))
    xp = jnp.pad(x[:, None, :], ((0, 0), (0, 0), (0, nlatp - nlatent)))

    out = point_trans_mlp_adj_decoder_pallas(
        xp, gp, pad_params(params, dim), row_tile=rt, npp_pad=npp_pad)

    # (P, B, 8, npp_pad) -> (B, npoint, 3)
    out = out[:, :, :3, :npp]                                        # (P, B, 3, npp)
    out = jnp.transpose(out, (1, 0, 3, 2)).reshape(B, npatch * npp, 3)
    return out, patches


def reference_forward(x, grids, params, npatch, dim, nlatent, npp):
    """Plain-JAX reference mirroring the PyTorch forward (same default
    matmul precision as the kernel)."""
    B = x.shape[0]
    mm = lambda a, b: jnp.matmul(a, b, precision=jax.lax.Precision.DEFAULT)
    outs = []
    for i in range(npatch):
        rand_grid = jnp.broadcast_to(grids[i], (B, dim, npp))
        y_lat = jnp.broadcast_to(x[:, :, None], (B, nlatent, npp))
        y = jnp.concatenate([rand_grid, y_lat], axis=1)              # (B, c0, npp)
        h = jnp.transpose(y, (0, 2, 1))                              # (B, npp, c0)
        h = jnp.maximum(mm(h, params["w1"][i]) + params["b1"][i], 0.0)
        h = jnp.maximum(mm(h, params["w2"][i]) + params["b2"][i], 0.0)
        h = jnp.maximum(mm(h, params["w3"][i]) + params["b3"][i], 0.0)
        h = jnp.tanh(mm(h, params["w4"][i]) + params["b4"][i])       # (B, npp, 3)
        outs.append(jnp.transpose(h, (0, 2, 1)))                     # (B, 3, npp)
    out = jnp.concatenate(outs, axis=2)                              # (B, 3, npoint)
    return jnp.transpose(out, (0, 2, 1))                             # (B, npoint, 3)


# ----------------------------------- Main ---------------------------------- #
if __name__ == "__main__":
    # Small, forward-consistent option values.
    B = 2            # batch
    NLATENT = 32     # options.base_decoder_nlatent
    DIM = 3          # options.base_decoder_patchDim
    NPATCH = 4       # options.base_decoder_npatch
    NPOINT = 64      # options.full_resample_npoints (mode='full')
    NPP = NPOINT // NPATCH
    C0 = DIM + NLATENT

    key = jax.random.PRNGKey(0)
    key, kx = jax.random.split(key)
    x = jax.random.normal(kx, (B, NLATENT), jnp.float32)

    params, key = init_decoder_params(key, NPATCH, C0)
    grids, key = init_grid_params(key, NPATCH, DIM, NPP)

    out, patches = forward(x, grids, params, NPATCH, DIM, NLATENT, NPP)
    out = jax.block_until_ready(out)
    patches = [jax.block_until_ready(p) for p in patches]

    assert out.shape == (B, NPOINT, 3), out.shape
    assert len(patches) == NPATCH and patches[0].shape == (NPP, DIM)
    assert bool(jnp.all(jnp.isfinite(out))), "non-finite values in kernel output"

    ref = jax.block_until_ready(
        reference_forward(x, grids, params, NPATCH, DIM, NLATENT, NPP))
    err = float(jnp.max(jnp.abs(out - ref)))
    # Both kernel and reference use default (single-pass bf16) MXU precision;
    # residual difference comes only from contraction grouping.
    assert err < 1e-2, err

    print("KERNEL_OK")
</pallas_src>

<mosaic_0001>
module attributes {stable_mosaic.version = 11 : i64} {
  func.func @_mlp_adj_kernel(%arg0: i32, %arg1: i32, %arg2: i32, %arg3: memref<1x1x128xf32, #tpu.memory_space<vmem>>, %arg4: memref<1x16x8xf32, #tpu.memory_space<vmem>>, %arg5: memref<1x8x128xf32, #tpu.memory_space<vmem>>, %arg6: memref<1x128x128xf32, #tpu.memory_space<vmem>>, %arg7: memref<1x1x128xf32, #tpu.memory_space<vmem>>, %arg8: memref<1x128x128xf32, #tpu.memory_space<vmem>>, %arg9: memref<1x1x128xf32, #tpu.memory_space<vmem>>, %arg10: memref<1x128x128xf32, #tpu.memory_space<vmem>>, %arg11: memref<1x1x128xf32, #tpu.memory_space<vmem>>, %arg12: memref<1x8x128xf32, #tpu.memory_space<vmem>>, %arg13: memref<1x8x1xf32, #tpu.memory_space<vmem>>, %arg14: memref<1x1x8x16xf32, #tpu.memory_space<vmem>>) attributes {dimension_semantics = [#tpu.dimension_semantics<parallel>, #tpu.dimension_semantics<parallel>, #tpu.dimension_semantics<parallel>], iteration_bounds = array<i64: 4, 2, 1>, scalar_prefetch = 0 : i64, scratch_operands = 0 : i64, tpu.core_type = #tpu.core_type<tc>, window_params = [{transform_indices = @transform_0, window_bounds = array<i64: 1, 1, 128>}, {transform_indices = @transform_1, window_bounds = array<i64: 1, 16, 8>}, {transform_indices = @transform_2, window_bounds = array<i64: 1, 8, 128>}, {transform_indices = @transform_3, window_bounds = array<i64: 1, 128, 128>}, {transform_indices = @transform_4, window_bounds = array<i64: 1, 1, 128>}, {transform_indices = @transform_5, window_bounds = array<i64: 1, 128, 128>}, {transform_indices = @transform_6, window_bounds = array<i64: 1, 1, 128>}, {transform_indices = @transform_7, window_bounds = array<i64: 1, 128, 128>}, {transform_indices = @transform_8, window_bounds = array<i64: 1, 1, 128>}, {transform_indices = @transform_9, window_bounds = array<i64: 1, 8, 128>}, {transform_indices = @transform_10, window_bounds = array<i64: 1, 8, 1>}, {transform_indices = @transform_11, window_bounds = array<i64: 1, 1, 8, 16>}]} {
    %c0 = arith.constant 0 : index
    %c0_0 = arith.constant 0 : index
    %c0_1 = arith.constant 0 : index
    %0 = vector.load %arg3[%c0, %c0_0, %c0_1] : memref<1x1x128xf32, #tpu.memory_space<vmem>>, vector<1x1x128xf32>
    %1 = vector.shape_cast %0 : vector<1x1x128xf32> to vector<1x128xf32>
    %c0_2 = arith.constant 0 : index
    %c0_3 = arith.constant 0 : index
    %c0_4 = arith.constant 0 : index
    %2 = vector.load %arg6[%c0_2, %c0_3, %c0_4] : memref<1x128x128xf32, #tpu.memory_space<vmem>>, vector<1x128x128xf32>
    %3 = vector.shape_cast %2 : vector<1x128x128xf32> to vector<128x128xf32>
    %cst = arith.constant dense<0.000000e+00> : vector<1x128xf32>
    %4 = tpu.matmul %1, %3, %cst {dimension_numbers = #tpu.dot_dimension_numbers<[1], [0], [0], [1], [0, 0, 1, 1], [], []>} : vector<1x128xf32>, vector<128x128xf32>, vector<1x128xf32> -> vector<1x128xf32>
    %c0_5 = arith.constant 0 : index
    %c0_6 = arith.constant 0 : index
    %c0_7 = arith.constant 0 : index
    %5 = vector.load %arg4[%c0_5, %c0_6, %c0_7] : memref<1x16x8xf32, #tpu.memory_space<vmem>>, vector<1x16x8xf32>
    %6 = vector.shape_cast %5 : vector<1x16x8xf32> to vector<16x8xf32>
    %c0_8 = arith.constant 0 : index
    %c0_9 = arith.constant 0 : index
    %c0_10 = arith.constant 0 : index
    %7 = vector.load %arg5[%c0_8, %c0_9, %c0_10] : memref<1x8x128xf32, #tpu.memory_space<vmem>>, vector<1x8x128xf32>
    %8 = vector.shape_cast %7 : vector<1x8x128xf32> to vector<8x128xf32>
    %cst_11 = arith.constant dense<0.000000e+00> : vector<16x128xf32>
    %9 = tpu.matmul %6, %8, %cst_11 {dimension_numbers = #tpu.dot_dimension_numbers<[1], [0], [0], [1], [0, 0, 1, 1], [], []>} : vector<16x8xf32>, vector<8x128xf32>, vector<16x128xf32> -> vector<16x128xf32>
    %10 = vector.broadcast %4 : vector<1x128xf32> to vector<16x128xf32>
    %11 = arith.addf %9, %10 : vector<16x128xf32>
    %c0_12 = arith.constant 0 : index
    %c0_13 = arith.constant 0 : index
    %c0_14 = arith.constant 0 : index
    %12 = vector.load %arg7[%c0_12, %c0_13, %c0_14] : memref<1x1x128xf32, #tpu.memory_space<vmem>>, vector<1x1x128xf32>
    %13 = vector.shape_cast %12 : vector<1x1x128xf32> to vector<1x128xf32>
    %14 = vector.broadcast %13 : vector<1x128xf32> to vector<16x128xf32>
    %15 = arith.addf %11, %14 : vector<16x128xf32>
    %cst_15 = arith.constant 0.000000e+00 : f32
    %16 = vector.broadcast %cst_15 : f32 to vector<16x128xf32>
    %17 = arith.maximumf %15, %16 : vector<16x128xf32>
    %c0_16 = arith.constant 0 : index
    %c0_17 = arith.constant 0 : index
    %c0_18 = arith.constant 0 : index
    %18 = vector.load %arg8[%c0_16, %c0_17, %c0_18] : memref<1x128x128xf32, #tpu.memory_space<vmem>>, vector<1x128x128xf32>
    %19 = vector.shape_cast %18 : vector<1x128x128xf32> to vector<128x128xf32>
    %cst_19 = arith.constant dense<0.000000e+00> : vector<16x128xf32>
    %20 = tpu.matmul %17, %19, %cst_19 {dimension_numbers = #tpu.dot_dimension_numbers<[1], [0], [0], [1], [0, 0, 1, 1], [], []>} : vector<16x128xf32>, vector<128x128xf32>, vector<16x128xf32> -> vector<16x128xf32>
    %c0_20 = arith.constant 0 : index
    %c0_21 = arith.constant 0 : index
    %c0_22 = arith.constant 0 : index
    %21 = vector.load %arg9[%c0_20, %c0_21, %c0_22] : memref<1x1x128xf32, #tpu.memory_space<vmem>>, vector<1x1x128xf32>
    %22 = vector.shape_cast %21 : vector<1x1x128xf32> to vector<1x128xf32>
    %23 = vector.broadcast %22 : vector<1x128xf32> to vector<16x128xf32>
    %24 = arith.addf %20, %23 : vector<16x128xf32>
    %cst_23 = arith.constant 0.000000e+00 : f32
    %25 = vector.broadcast %cst_23 : f32 to vector<16x128xf32>
    %26 = arith.maximumf %24, %25 : vector<16x128xf32>
    %c0_24 = arith.constant 0 : index
    %c0_25 = arith.constant 0 : index
    %c0_26 = arith.constant 0 : index
    %27 = vector.load %arg10[%c0_24, %c0_25, %c0_26] : memref<1x128x128xf32, #tpu.memory_space<vmem>>, vector<1x128x128xf32>
    %28 = vector.shape_cast %27 : vector<1x128x128xf32> to vector<128x128xf32>
    %cst_27 = arith.constant dense<0.000000e+00> : vector<16x128xf32>
    %29 = tpu.matmul %26, %28, %cst_27 {dimension_numbers = #tpu.dot_dimension_numbers<[1], [0], [0], [1], [0, 0, 1, 1], [], []>} : vector<16x128xf32>, vector<128x128xf32>, vector<16x128xf32> -> vector<16x128xf32>
    %c0_28 = arith.constant 0 : index
    %c0_29 = arith.constant 0 : index
    %c0_30 = arith.constant 0 : index
    %30 = vector.load %arg11[%c0_28, %c0_29, %c0_30] : memref<1x1x128xf32, #tpu.memory_space<vmem>>, vector<1x1x128xf32>
    %31 = vector.shape_cast %30 : vector<1x1x128xf32> to vector<1x128xf32>
    %32 = vector.broadcast %31 : vector<1x128xf32> to vector<16x128xf32>
    %33 = arith.addf %29, %32 : vector<16x128xf32>
    %cst_31 = arith.constant 0.000000e+00 : f32
    %34 = vector.broadcast %cst_31 : f32 to vector<16x128xf32>
    %35 = arith.maximumf %33, %34 : vector<16x128xf32>
    %c0_32 = arith.constant 0 : index
    %c0_33 = arith.constant 0 : index
    %c0_34 = arith.constant 0 : index
    %36 = vector.load %arg12[%c0_32, %c0_33, %c0_34] : memref<1x8x128xf32, #tpu.memory_space<vmem>>, vector<1x8x128xf32>
    %37 = vector.shape_cast %36 : vector<1x8x128xf32> to vector<8x128xf32>
    %cst_35 = arith.constant dense<0.000000e+00> : vector<8x16xf32>
    %38 = tpu.matmul %37, %35, %cst_35 {dimension_numbers = #tpu.dot_dimension_numbers<[1], [1], [0], [0], [0, 0, 1, 0], [], []>} : vector<8x128xf32>, vector<16x128xf32>, vector<8x16xf32> -> vector<8x16xf32>
    %c0_36 = arith.constant 0 : index
    %c0_37 = arith.constant 0 : index
    %c0_38 = arith.constant 0 : index
    %39 = vector.load %arg13[%c0_36, %c0_37, %c0_38] : memref<1x8x1xf32, #tpu.memory_space<vmem>>, vector<1x8x1xf32>
    %40 = vector.shape_cast %39 : vector<1x8x1xf32> to vector<8x1xf32>
    %41 = vector.broadcast %40 : vector<8x1xf32> to vector<8x16xf32>
    %42 = arith.addf %38, %41 : vector<8x16xf32>
    %43 = math.tanh %42 : vector<8x16xf32>
    %c0_39 = arith.constant 0 : index
    %c0_40 = arith.constant 0 : index
    %c0_41 = arith.constant 0 : index
    %c0_42 = arith.constant 0 : index
    %44 = vector.load %arg14[%c0_39, %c0_40, %c0_41, %c0_42] : memref<1x1x8x16xf32, #tpu.memory_space<vmem>>, vector<1x1x8x16xf32>
    %45 = vector.shape_cast %44 : vector<1x1x8x16xf32> to vector<8x16xf32>
    %46 = vector.shape_cast %43 : vector<8x16xf32> to vector<1x1x8x16xf32>
    tpu.vector_store %arg14[%c0_39, %c0_40, %c0_41, %c0_42], %46 {strides = array<i32>} : memref<1x1x8x16xf32, #tpu.memory_space<vmem>>, vector<1x1x8x16xf32>,
    return
  }
  func.func @transform_0(%arg0: i32, %arg1: i32, %arg2: i32) -> (i32, i32, i32) {
    %c0_i32 = arith.constant 0 : i32
    %c0_i32_0 = arith.constant 0 : i32
    %c0_i32_1 = arith.constant 0 : i32
    return %arg1, %c0_i32, %c0_i32_0 : i32, i32, i32
  }
  func.func @transform_1(%arg0: i32, %arg1: i32, %arg2: i32) -> (i32, i32, i32) {
    %c0_i32 = arith.constant 0 : i32
    %c0_i32_0 = arith.constant 0 : i32
    return %arg0, %arg2, %c0_i32 : i32, i32, i32
  }
  func.func @transform_2(%arg0: i32, %arg1: i32, %arg2: i32) -> (i32, i32, i32) {
    %c0_i32 = arith.constant 0 : i32
    %c0_i32_0 = arith.constant 0 : i32
    %c0_i32_1 = arith.constant 0 : i32
    return %arg0, %c0_i32, %c0_i32_0 : i32, i32, i32
  }
  func.func @transform_3(%arg0: i32, %arg1: i32, %arg2: i32) -> (i32, i32, i32) {
    %c0_i32 = arith.constant 0 : i32
    %c0_i32_0 = arith.constant 0 : i32
    %c0_i32_1 = arith.constant 0 : i32
    return %arg0, %c0_i32, %c0_i32_0 : i32, i32, i32
  }
  func.func @transform_4(%arg0: i32, %arg1: i32, %arg2: i32) -> (i32, i32, i32) {
    %c0_i32 = arith.constant 0 : i32
    %c0_i32_0 = arith.constant 0 : i32
    %c0_i32_1 = arith.constant 0 : i32
    return %arg0, %c0_i32, %c0_i32_0 : i32, i32, i32
  }
  func.func @transform_5(%arg0: i32, %arg1: i32, %arg2: i32) -> (i32, i32, i32) {
    %c0_i32 = arith.constant 0 : i32
    %c0_i32_0 = arith.constant 0 : i32
    %c0_i32_1 = arith.constant 0 : i32
    return %arg0, %c0_i32, %c0_i32_0 : i32, i32, i32
  }
  func.func @transform_6(%arg0: i32, %arg1: i32, %arg2: i32) -> (i32, i32, i32) {
    %c0_i32 = arith.constant 0 : i32
    %c0_i32_0 = arith.constant 0 : i32
    %c0_i32_1 = arith.constant 0 : i32
    return %arg0, %c0_i32, %c0_i32_0 : i32, i32, i32
  }
  func.func @transform_7(%arg0: i32, %arg1: i32, %arg2: i32) -> (i32, i32, i32) {
    %c0_i32 = arith.constant 0 : i32
    %c0_i32_0 = arith.constant 0 : i32
    %c0_i32_1 = arith.constant 0 : i32
    return %arg0, %c0_i32, %c0_i32_0 : i32, i32, i32
  }
  func.func @transform_8(%arg0: i32, %arg1: i32, %arg2: i32) -> (i32, i32, i32) {
    %c0_i32 = arith.constant 0 : i32
    %c0_i32_0 = arith.constant 0 : i32
    %c0_i32_1 = arith.constant 0 : i32
    return %arg0, %c0_i32, %c0_i32_0 : i32, i32, i32
  }
  func.func @transform_9(%arg0: i32, %arg1: i32, %arg2: i32) -> (i32, i32, i32) {
    %c0_i32 = arith.constant 0 : i32
    %c0_i32_0 = arith.constant 0 : i32
    %c0_i32_1 = arith.constant 0 : i32
    return %arg0, %c0_i32, %c0_i32_0 : i32, i32, i32
  }
  func.func @transform_10(%arg0: i32, %arg1: i32, %arg2: i32) -> (i32, i32, i32) {
    %c0_i32 = arith.constant 0 : i32
    %c0_i32_0 = arith.constant 0 : i32
    %c0_i32_1 = arith.constant 0 : i32
    return %arg0, %c0_i32, %c0_i32_0 : i32, i32, i32
  }
  func.func @transform_11(%arg0: i32, %arg1: i32, %arg2: i32) -> (i32, i32, i32, i32) {
    %c0_i32 = arith.constant 0 : i32
    %c0_i32_0 = arith.constant 0 : i32
    return %arg0, %arg1, %c0_i32, %arg2 : i32, i32, i32, i32
  }
}

</mosaic_0001>

<llo_original>
// kernel: tpu_custom_call.1
$region0: #{tpu_custom_call.1}
  #allocation0 [shape = 'u32[]', space=smem, size = 0x4, offset = 0x4, fixed_abs, tag = 'smem constant byte address 0x4 - core index']
  #allocation1 [shape = 'u32[144,128]{1,0:T(1,128)}', space=vmem, size = 0x12000, scoped, tag = 'internal scratch']
  %s0 = inlined_call_operand.vmem [shape: f32[2,1,128], index: 0, kind: input, shape index: {}]
  %s1 = inlined_call_operand.vmem [shape: f32[4,16,8], index: 1, kind: input, shape index: {}]
  %s2 = inlined_call_operand.vmem [shape: f32[4,8,128], index: 2, kind: input, shape index: {}]
  %s3 = inlined_call_operand.hbm [shape: f32[4,128,128], index: 3, kind: input, shape index: {}]
  %s4 = inlined_call_operand.vmem [shape: f32[4,1,128], index: 4, kind: input, shape index: {}]
  %s5 = inlined_call_operand.hbm [shape: f32[4,128,128], index: 5, kind: input, shape index: {}]
  %s6 = inlined_call_operand.vmem [shape: f32[4,1,128], index: 6, kind: input, shape index: {}]
  %s7 = inlined_call_operand.hbm [shape: f32[4,128,128], index: 7, kind: input, shape index: {}]
  %s8 = inlined_call_operand.vmem [shape: f32[4,1,128], index: 8, kind: input, shape index: {}]
  %s9 = inlined_call_operand.vmem [shape: f32[4,8,128], index: 9, kind: input, shape index: {}]
  %s10 = inlined_call_operand.vmem [shape: f32[4,8,1], index: 10, kind: input, shape index: {}]
  %s11 = inlined_call_operand.hbm [shape: f32[4,2,8,16], index: 11, kind: output, shape index: {}]
  %s12 = sld [smem:[#allocation0]]
  $region89: #{tpu_custom_call.1} parent=0
    _
  %s14 = ssub.s32 1, %s12
  %s15 = scalar_select 0, %s14, %s12
  $region1: #{tpu_custom_call.1} parent=0
    #allocation2 [shape = 'u8[131072]{0}', space=vmem, size = 0x20000, scoped, tag = 'input window, operand 3']
    #allocation3 [shape = 's32[2]{0}', space=sflag, size = 0x8, scoped, tag = 'scoped memory for tpu_custom_call.1']
    #allocation4 [shape = 's32[2]{0}', space=sflag, size = 0x8, scoped, tag = 'scoped memory for tpu_custom_call.1']
    #allocation5 [shape = 'u8[131072]{0}', space=vmem, size = 0x20000, scoped, tag = 'input window, operand 5']
    #allocation6 [shape = 's32[2]{0}', space=sflag, size = 0x8, scoped, tag = 'scoped memory for tpu_custom_call.1']
    #allocation7 [shape = 'u8[131072]{0}', space=vmem, size = 0x20000, scoped, tag = 'input window, operand 7']
    #allocation8 [shape = 'u8[8192]{0}', space=vmem, size = 0x2000, scoped, tag = 'output window, operand 0']
    %16 = vsyncpa [#allocation3], 0
    %s17 = scalar_lea.sflag [#allocation3], 1
    %18 = vsyncpa %s17, 0
    %19 = vsyncpa [#allocation6], 0
    %s20 = scalar_lea.sflag [#allocation6], 1
    %21 = vsyncpa %s20, 0
    %22 = vsyncpa [#allocation4], 0
    %s23 = scalar_lea.sflag [#allocation4], 1
    %24 = vsyncpa %s23, 0
    loop: start=0, step=1, limit=10
    $region2: #{tpu_custom_call.1} parent=1 // loop_pre_header
      _
    $region3: #{tpu_custom_call.1} parent=1 // loop_header
      %s26 = sphi 0, %s30
      %p27 = scmp.ge.s32.totalorder %s26, 10
      %s33 = sphi 0, %s52
      %s34 = sphi 0, %s48
      %s35 = sphi 0, %s44
      %s36 = sphi 0, %s33
      %s37 = sphi 0, %s34
      %s38 = sphi 0, %s35
      %s39 = sphi 0, %s36
      %s40 = sphi 0, %s37
      %s41 = sphi 0, %s38
      %s55 = sphi 0, %s57
      %s58 = sphi 0, %s55
      %s59 = sphi 0, %s58
      %s75 = sphi 0, %s59
      %s83 = sphi 0, %s85
      %s86 = sphi 0, %s83
      %s87 = sphi 0, %s86
      %s103 = sphi 0, %s87
      %s109 = sphi 0, %s111
      %s112 = sphi 0, %s109
      %s113 = sphi 0, %s112
      %s129 = sphi 0, %s113
      %s135 = sphi 0, %s137
      %s138 = sphi 0, %s135
      %s139 = sphi 0, %s138
      %s155 = sphi 0, %s139
      %s161 = sphi 0, %s163
      %s164 = sphi 0, %s161
      %s165 = sphi 0, %s164
      %s181 = sphi 0, %s165
      %s187 = sphi 0, %s189
      %s190 = sphi 0, %s187
      %s191 = sphi 0, %s190
      %s207 = sphi 0, %s191
      %s213 = sphi 0, %s215
      %s216 = sphi 0, %s213
      %s217 = sphi 0, %s216
      %s233 = sphi 0, %s217
      %s239 = sphi 0, %s241
      %s242 = sphi 0, %s239
      %s243 = sphi 0, %s242
      %s259 = sphi 0, %s243
      %s265 = sphi 0, %s267
      %s268 = sphi 0, %s265
      %s269 = sphi 0, %s268
      %s285 = sphi 0, %s269
      %s291 = sphi 0, %s293
      %s294 = sphi 0, %s291
      %s295 = sphi 0, %s294
      %s311 = sphi 0, %s295
      %s317 = sphi 0, %s319
      %s320 = sphi 0, %s317
      %s321 = sphi 0, %s320
      %s337 = sphi 0, %s321
      %s347 = sphi 0, %s349
      %s350 = sphi 0, %s347
      %s351 = sphi 0, %s350
      %s367 = sphi 0, %s351
    $region4: #{tpu_custom_call.1} parent=1 // loop_header_branch
      %29 = sbr.rel (%p27) target = $region8
    $region5: #{tpu_custom_call.1} parent=1 // loop_body
      %s31 = ssub.s32 %s26, 1
      %s32 = ssub.s32 %s26, 2
      %s42 = sadd.s32 1, %s35
      %p43 = scmp.ge.s32.totalorder %s42, 1
      %s44 = scalar_select %p43, 0, %s42
      %s45 = sadd.s32 1, %s34
      %s46 = scalar_select %p43, %s45, %s34
      %p47 = scmp.ge.s32.totalorder %s46, 2
      %s48 = scalar_select %p47, 0, %s46
      %s49 = sadd.s32 1, %s33
      %s50 = scalar_select %p47, %s49, %s33
      %p51 = scmp.ge.s32.totalorder %s50, 4
      %s52 = scalar_select %p51, 0, %s50
      %s53 = ssub.s32 %s34, %s48
      %p54 = scmp.eq.s32.totalorder %s53, 0
      %s56 = sadd.s32 %s55, 1
      %s57 = scalar_select %p54, %s55, %s56
      %p60 = pneg %p54
      %p61 = scmp.eq.s32.totalorder %s26, 7
      %p62 = por %p60, %p61
      %p63 = scmp.ne.s32.totalorder %s55, %s58
      %p64 = scmp.eq.s32.totalorder %s26, 0
      %p65 = por %p63, %p64
      %p66 = scmp.ne.s32.totalorder %s55, %s58
      %p67 = scmp.eq.s32.totalorder %s31, 7
      %p68 = por %p66, %p67
      %p69 = scmp.ne.s32.totalorder %s58, %s59
      %p70 = scmp.eq.s32.totalorder %s31, 0
      %p71 = por %p69, %p70
      %p72 = scmp.ne.s32.totalorder %s58, %s59
      %p73 = scmp.eq.s32.totalorder %s32, 7
      %p74 = por %p72, %p73
      %p76 = scmp.ne.s32.totalorder %s59, %s75
      %p77 = scmp.eq.s32.totalorder %s32, 0
      %p78 = por %p76, %p77
      %s79 = ssub.s32 %s33, %s52
      %s80 = ssub.s32 %s35, %s44
      %s81 = sor.u32 %s79, %s80
      %p82 = scmp.eq.s32.totalorder %s81, 0
      %s84 = sadd.s32 %s83, 1
      %s85 = scalar_select %p82, %s83, %s84
      %p88 = pneg %p82
      %p89 = scmp.eq.s32.totalorder %s26, 7
      %p90 = por %p88, %p89
      %p91 = scmp.ne.s32.totalorder %s83, %s86
      %p92 = scmp.eq.s32.totalorder %s26, 0
      %p93 = por %p91, %p92
      %p94 = scmp.ne.s32.totalorder %s83, %s86
      %p95 = scmp.eq.s32.totalorder %s31, 7
      %p96 = por %p94, %p95
      %p97 = scmp.ne.s32.totalorder %s86, %s87
      %p98 = scmp.eq.s32.totalorder %s31, 0
      %p99 = por %p97, %p98
      %p100 = scmp.ne.s32.totalorder %s86, %s87
      %p101 = scmp.eq.s32.totalorder %s32, 7
      %p102 = por %p100, %p101
      %p104 = scmp.ne.s32.totalorder %s87, %s103
      %p105 = scmp.eq.s32.totalorder %s32, 0
      %p106 = por %p104, %p105
      %s107 = ssub.s32 %s33, %s52
      %p108 = scmp.eq.s32.totalorder %s107, 0
      %s110 = sadd.s32 %s109, 1
      %s111 = scalar_select %p108, %s109, %s110
      %p114 = pneg %p108
      %p115 = scmp.eq.s32.totalorder %s26, 7
      %p116 = por %p114, %p115
      %p117 = scmp.ne.s32.totalorder %s109, %s112
      %p118 = scmp.eq.s32.totalorder %s26, 0
      %p119 = por %p117, %p118
      %p120 = scmp.ne.s32.totalorder %s109, %s112
      %p121 = scmp.eq.s32.totalorder %s31, 7
      %p122 = por %p120, %p121
      %p123 = scmp.ne.s32.totalorder %s112, %s113
      %p124 = scmp.eq.s32.totalorder %s31, 0
      %p125 = por %p123, %p124
      %p126 = scmp.ne.s32.totalorder %s112, %s113
      %p127 = scmp.eq.s32.totalorder %s32, 7
      %p128 = por %p126, %p127
      %p130 = scmp.ne.s32.totalorder %s113, %s129
      %p131 = scmp.eq.s32.totalorder %s32, 0
      %p132 = por %p130, %p131
      %s133 = ssub.s32 %s33, %s52
      %p134 = scmp.eq.s32.totalorder %s133, 0
      %s136 = sadd.s32 %s135, 1
      %s137 = scalar_select %p134, %s135, %s136
      %p140 = pneg %p134
      %p141 = scmp.eq.s32.totalorder %s26, 7
      %p142 = por %p140, %p141
      %p143 = scmp.ne.s32.totalorder %s135, %s138
      %p144 = scmp.eq.s32.totalorder %s26, 0
      %p145 = por %p143, %p144
      %p146 = scmp.ne.s32.totalorder %s135, %s138
      %p147 = scmp.eq.s32.totalorder %s31, 7
      %p148 = por %p146, %p147
      %p149 = scmp.ne.s32.totalorder %s138, %s139
      %p150 = scmp.eq.s32.totalorder %s31, 0
      %p151 = por %p149, %p150
      %p152 = scmp.ne.s32.totalorder %s138, %s139
      %p153 = scmp.eq.s32.totalorder %s32, 7
      %p154 = por %p152, %p153
      %p156 = scmp.ne.s32.totalorder %s139, %s155
      %p157 = scmp.eq.s32.totalorder %s32, 0
      %p158 = por %p156, %p157
      %s159 = ssub.s32 %s33, %s52
      %p160 = scmp.eq.s32.totalorder %s159, 0
      %s162 = sadd.s32 %s161, 1
      %s163 = scalar_select %p160, %s161, %s162
      %p166 = pneg %p160
      %p167 = scmp.eq.s32.totalorder %s26, 7
      %p168 = por %p166, %p167
      %p169 = scmp.ne.s32.totalorder %s161, %s164
      %p170 = scmp.eq.s32.totalorder %s26, 0
      %p171 = por %p169, %p170
      %p172 = scmp.ne.s32.totalorder %s161, %s164
      %p173 = scmp.eq.s32.totalorder %s31, 7
      %p174 = por %p172, %p173
      %p175 = scmp.ne.s32.totalorder %s164, %s165
      %p176 = scmp.eq.s32.totalorder %s31, 0
      %p177 = por %p175, %p176
      %p178 = scmp.ne.s32.totalorder %s164, %s165
      %p179 = scmp.eq.s32.totalorder %s32, 7
      %p180 = por %p178, %p179
      %p182 = scmp.ne.s32.totalorder %s165, %s181
      %p183 = scmp.eq.s32.totalorder %s32, 0
      %p184 = por %p182, %p183
      %s185 = ssub.s32 %s33, %s52
      %p186 = scmp.eq.s32.totalorder %s185, 0
      %s188 = sadd.s32 %s187, 1
      %s189 = scalar_select %p186, %s187, %s188
      %p192 = pneg %p186
      %p193 = scmp.eq.s32.totalorder %s26, 7
      %p194 = por %p192, %p193
      %p195 = scmp.ne.s32.totalorder %s187, %s190
      %p196 = scmp.eq.s32.totalorder %s26, 0
      %p197 = por %p195, %p196
      %p198 = scmp.ne.s32.totalorder %s187, %s190
      %p199 = scmp.eq.s32.totalorder %s31, 7
      %p200 = por %p198, %p199
      %p201 = scmp.ne.s32.totalorder %s190, %s191
      %p202 = scmp.eq.s32.totalorder %s31, 0
      %p203 = por %p201, %p202
      %p204 = scmp.ne.s32.totalorder %s190, %s191
      %p205 = scmp.eq.s32.totalorder %s32, 7
      %p206 = por %p204, %p205
      %p208 = scmp.ne.s32.totalorder %s191, %s207
      %p209 = scmp.eq.s32.totalorder %s32, 0
      %p210 = por %p208, %p209
      %s211 = ssub.s32 %s33, %s52
      %p212 = scmp.eq.s32.totalorder %s211, 0
      %s214 = sadd.s32 %s213, 1
      %s215 = scalar_select %p212, %s213, %s214
      %p218 = pneg %p212
      %p219 = scmp.eq.s32.totalorder %s26, 7
      %p220 = por %p218, %p219
      %p221 = scmp.ne.s32.totalorder %s213, %s216
      %p222 = scmp.eq.s32.totalorder %s26, 0
      %p223 = por %p221, %p222
      %p224 = scmp.ne.s32.totalorder %s213, %s216
      %p225 = scmp.eq.s32.totalorder %s31, 7
      %p226 = por %p224, %p225
      %p227 = scmp.ne.s32.totalorder %s216, %s217
      %p228 = scmp.eq.s32.totalorder %s31, 0
      %p229 = por %p227, %p228
      %p230 = scmp.ne.s32.totalorder %s216, %s217
      %p231 = scmp.eq.s32.totalorder %s32, 7
      %p232 = por %p230, %p231
      %p234 = scmp.ne.s32.totalorder %s217, %s233
      %p235 = scmp.eq.s32.totalorder %s32, 0
      %p236 = por %p234, %p235
      %s237 = ssub.s32 %s33, %s52
      %p238 = scmp.eq.s32.totalorder %s237, 0
      %s240 = sadd.s32 %s239, 1
      %s241 = scalar_select %p238, %s239, %s240
      %p244 = pneg %p238
      %p245 = scmp.eq.s32.totalorder %s26, 7
      %p246 = por %p244, %p245
      %p247 = scmp.ne.s32.totalorder %s239, %s242
      %p248 = scmp.eq.s32.totalorder %s26, 0
      %p249 = por %p247, %p248
      %p250 = scmp.ne.s32.totalorder %s239, %s242
      %p251 = scmp.eq.s32.totalorder %s31, 7
      %p252 = por %p250, %p251
      %p253 = scmp.ne.s32.totalorder %s242, %s243
      %p254 = scmp.eq.s32.totalorder %s31, 0
      %p255 = por %p253, %p254
      %p256 = scmp.ne.s32.totalorder %s242, %s243
      %p257 = scmp.eq.s32.totalorder %s32, 7
      %p258 = por %p256, %p257
      %p260 = scmp.ne.s32.totalorder %s243, %s259
      %p261 = scmp.eq.s32.totalorder %s32, 0
      %p262 = por %p260, %p261
      %s263 = ssub.s32 %s33, %s52
      %p264 = scmp.eq.s32.totalorder %s263, 0
      %s266 = sadd.s32 %s265, 1
      %s267 = scalar_select %p264, %s265, %s266
      %p270 = pneg %p264
      %p271 = scmp.eq.s32.totalorder %s26, 7
      %p272 = por %p270, %p271
      %p273 = scmp.ne.s32.totalorder %s265, %s268
      %p274 = scmp.eq.s32.totalorder %s26, 0
      %p275 = por %p273, %p274
      %p276 = scmp.ne.s32.totalorder %s265, %s268
      %p277 = scmp.eq.s32.totalorder %s31, 7
      %p278 = por %p276, %p277
      %p279 = scmp.ne.s32.totalorder %s268, %s269
      %p280 = scmp.eq.s32.totalorder %s31, 0
      %p281 = por %p279, %p280
      %p282 = scmp.ne.s32.totalorder %s268, %s269
      %p283 = scmp.eq.s32.totalorder %s32, 7
      %p284 = por %p282, %p283
      %p286 = scmp.ne.s32.totalorder %s269, %s285
      %p287 = scmp.eq.s32.totalorder %s32, 0
      %p288 = por %p286, %p287
      %s289 = ssub.s32 %s33, %s52
      %p290 = scmp.eq.s32.totalorder %s289, 0
      %s292 = sadd.s32 %s291, 1
      %s293 = scalar_select %p290, %s291, %s292
      %p296 = pneg %p290
      %p297 = scmp.eq.s32.totalorder %s26, 7
      %p298 = por %p296, %p297
      %p299 = scmp.ne.s32.totalorder %s291, %s294
      %p300 = scmp.eq.s32.totalorder %s26, 0
      %p301 = por %p299, %p300
      %p302 = scmp.ne.s32.totalorder %s291, %s294
      %p303 = scmp.eq.s32.totalorder %s31, 7
      %p304 = por %p302, %p303
      %p305 = scmp.ne.s32.totalorder %s294, %s295
      %p306 = scmp.eq.s32.totalorder %s31, 0
      %p307 = por %p305, %p306
      %p308 = scmp.ne.s32.totalorder %s294, %s295
      %p309 = scmp.eq.s32.totalorder %s32, 7
      %p310 = por %p308, %p309
      %p312 = scmp.ne.s32.totalorder %s295, %s311
      %p313 = scmp.eq.s32.totalorder %s32, 0
      %p314 = por %p312, %p313
      %s315 = ssub.s32 %s33, %s52
      %p316 = scmp.eq.s32.totalorder %s315, 0
      %s318 = sadd.s32 %s317, 1
      %s319 = scalar_select %p316, %s317, %s318
      %p322 = pneg %p316
      %p323 = scmp.eq.s32.totalorder %s26, 7
      %p324 = por %p322, %p323
      %p325 = scmp.ne.s32.totalorder %s317, %s320
      %p326 = scmp.eq.s32.totalorder %s26, 0
      %p327 = por %p325, %p326
      %p328 = scmp.ne.s32.totalorder %s317, %s320
      %p329 = scmp.eq.s32.totalorder %s31, 7
      %p330 = por %p328, %p329
      %p331 = scmp.ne.s32.totalorder %s320, %s321
      %p332 = scmp.eq.s32.totalorder %s31, 0
      %p333 = por %p331, %p332
      %p334 = scmp.ne.s32.totalorder %s320, %s321
      %p335 = scmp.eq.s32.totalorder %s32, 7
      %p336 = por %p334, %p335
      %p338 = scmp.ne.s32.totalorder %s321, %s337
      %p339 = scmp.eq.s32.totalorder %s32, 0
      %p340 = por %p338, %p339
      %s341 = ssub.s32 %s33, %s52
      %s342 = ssub.s32 %s34, %s48
      %s343 = sor.u32 %s341, %s342
      %s344 = ssub.s32 %s35, %s44
      %s345 = sor.u32 %s343, %s344
      %p346 = scmp.eq.s32.totalorder %s345, 0
      %s348 = sadd.s32 %s347, 1
      %s349 = scalar_select %p346, %s347, %s348
      %p352 = pneg %p346
      %p353 = scmp.eq.s32.totalorder %s26, 7
      %p354 = por %p352, %p353
      %p355 = scmp.ne.s32.totalorder %s347, %s350
      %p356 = scmp.eq.s32.totalorder %s26, 0
      %p357 = por %p355, %p356
      %p358 = scmp.ne.s32.totalorder %s347, %s350
      %p359 = scmp.eq.s32.totalorder %s31, 7
      %p360 = por %p358, %p359
      %p361 = scmp.ne.s32.totalorder %s350, %s351
      %p362 = scmp.eq.s32.totalorder %s31, 0
      %p363 = por %p361, %p362
      %p364 = scmp.ne.s32.totalorder %s350, %s351
      %p365 = scmp.eq.s32.totalorder %s32, 7
      %p366 = por %p364, %p365
      %p368 = scmp.ne.s32.totalorder %s351, %s367
      %p369 = scmp.eq.s32.totalorder %s32, 0
      %p370 = por %p368, %p369
      %p371 = scmp.le.s32.totalorder 1, %s26
      %p372 = scmp.lt.s32.totalorder %s26, 9
      %p373 = pnand %p371, %p372
      %p374 = pneg %p373
      // Predicated region
      $region9: #{tpu_custom_call.1} parent=5 // pred_check
        _
      $region10: #{tpu_custom_call.1} parent=5 // pred_check_branch
        %376 = sbr.rel (%p373) target = $region12
      $region11: #{tpu_custom_call.1} parent=5 // pred_region
        %s377 = ssub.s32 %s26, 1
      $region12: #{tpu_custom_call.1} parent=5 // pred_fallthru
        _
      %p378 = scmp.lt.s32.totalorder %s26, 8
      // Predicated region
      $region13: #{tpu_custom_call.1} parent=5 // pred_check
        %p379 = pneg %p378
      $region14: #{tpu_custom_call.1} parent=5 // pred_check_branch
        %381 = sbr.rel (%p379) target = $region16
      $region15: #{tpu_custom_call.1} parent=5 // pred_region
        // Predicated region
        $region17: #{tpu_custom_call.1} parent=15 // pred_check
          %p382 = pneg %p65
        $region18: #{tpu_custom_call.1} parent=15 // pred_check_branch
          %384 = sbr.rel (%p382) target = $region20
        $region19: #{tpu_custom_call.1} parent=15 // pred_region
          %p385 = scmp.lt.s32.totalorder %s34, 1
          %s386 = scalar_select %p385, %s34, 1
          %s387 = scalar_lea.vmem %s0, %s386
        $region20: #{tpu_custom_call.1} parent=15 // pred_fallthru
          _
        // Predicated region
        $region21: #{tpu_custom_call.1} parent=15 // pred_check
          %p388 = pneg %p93
        $region22: #{tpu_custom_call.1} parent=15 // pred_check_branch
          %390 = sbr.rel (%p388) target = $region24
        $region23: #{tpu_custom_call.1} parent=15 // pred_region
          %s391 = smul.u32 2, %s35
          %p392 = scmp.lt.s32.totalorder %s33, 3
          %s393 = scalar_select %p392, %s33, 3
          %p394 = scmp.lt.s32.totalorder %s391, 1
          %s395 = scalar_select %p394, %s391, 1
          %s396 = smul.addr %s393, 2
          %s397 = sadd.s32 %s395, %s396
          %s398 = smul.addr %s397, 8
          %s399 = scalar_lea.vmem %s1, %s398
          %s400 = smul.u32 2, %s35
        $region24: #{tpu_custom_call.1} parent=15 // pred_fallthru
          _
        // Predicated region
        $region25: #{tpu_custom_call.1} parent=15 // pred_check
          %p401 = pneg %p119
        $region26: #{tpu_custom_call.1} parent=15 // pred_check_branch
          %403 = sbr.rel (%p401) target = $region28
        $region27: #{tpu_custom_call.1} parent=15 // pred_region
          %p404 = scmp.lt.s32.totalorder %s33, 3
          %s405 = scalar_select %p404, %s33, 3
          %s406 = smul.addr %s405, 8
          %s407 = scalar_lea.vmem %s2, %s406
        $region28: #{tpu_custom_call.1} parent=15 // pred_fallthru
          _
        // Predicated region
        $region29: #{tpu_custom_call.1} parent=15 // pred_check
          %p408 = pneg %p145
        $region30: #{tpu_custom_call.1} parent=15 // pred_check_branch
          %410 = sbr.rel (%p408) target = $region32
        $region31: #{tpu_custom_call.1} parent=15 // pred_region
          %s411 = sand.u32 %s135, 1
          %s412 = scalar_lea.sflag [#allocation3], %s411
          %s413 = sand.u32 %s135, 1
          %s414 = smul.addr %s413, 128
          %s415 = scalar_lea.vmem [#allocation2], %s414
          %s417 = ssub.s32 2048, 2048
          %418 = vsyncadd %s412, %s417
          %s419 = smul.addr %s33, 16
          %s420 = smul.addr %s419, 128
          %s421 = scalar_lea.hbm %s3, %s420
          %s422 = sshll.u32 %s415, 4
          %s423 = int_to_ptr.vmem [resolvable:$true] %s422
          %428 = dma.hbm_to_vmem [thread:$0]  %s421, 2048, %s423, %s412, 128, 128, 8
        $region32: #{tpu_custom_call.1} parent=15 // pred_fallthru
          _
        // Predicated region
        $region33: #{tpu_custom_call.1} parent=15 // pred_check
          %p429 = pneg %p171
        $region34: #{tpu_custom_call.1} parent=15 // pred_check_branch
          %431 = sbr.rel (%p429) target = $region36
        $region35: #{tpu_custom_call.1} parent=15 // pred_region
          %p432 = scmp.lt.s32.totalorder %s33, 3
          %s433 = scalar_select %p432, %s33, 3
          %s434 = scalar_lea.vmem %s4, %s433
        $region36: #{tpu_custom_call.1} parent=15 // pred_fallthru
          _
        // Predicated region
        $region37: #{tpu_custom_call.1} parent=15 // pred_check
          %p435 = pneg %p197
        $region38: #{tpu_custom_call.1} parent=15 // pred_check_branch
          %437 = sbr.rel (%p435) target = $region40
        $region39: #{tpu_custom_call.1} parent=15 // pred_region
          %s438 = sand.u32 %s26, 1
          %s439 = scalar_lea.sflag [#allocation6], %s438
          %s440 = sand.u32 %s187, 1
          %s441 = smul.addr %s440, 128
          %s442 = scalar_lea.vmem [#allocation5], %s441
          %s444 = ssub.s32 2048, 2048
          %445 = vsyncadd %s439, %s444
          %s446 = smul.addr %s33, 16
          %s447 = smul.addr %s446, 128
          %s448 = scalar_lea.hbm %s5, %s447
          %s449 = sshll.u32 %s442, 4
          %s450 = int_to_ptr.vmem [resolvable:$true] %s449
          %455 = dma.hbm_to_vmem [thread:$0]  %s448, 2048, %s450, %s439, 128, 128, 8
        $region40: #{tpu_custom_call.1} parent=15 // pred_fallthru
          _
        // Predicated region
        $region41: #{tpu_custom_call.1} parent=15 // pred_check
          %p456 = pneg %p223
        $region42: #{tpu_custom_call.1} parent=15 // pred_check_branch
          %458 = sbr.rel (%p456) target = $region44
        $region43: #{tpu_custom_call.1} parent=15 // pred_region
          %p459 = scmp.lt.s32.totalorder %s33, 3
          %s460 = scalar_select %p459, %s33, 3
          %s461 = scalar_lea.vmem %s6, %s460
        $region44: #{tpu_custom_call.1} parent=15 // pred_fallthru
          _
        // Predicated region
        $region45: #{tpu_custom_call.1} parent=15 // pred_check
          %p462 = pneg %p249
        $region46: #{tpu_custom_call.1} parent=15 // pred_check_branch
          %464 = sbr.rel (%p462) target = $region48
        $region47: #{tpu_custom_call.1} parent=15 // pred_region
          %s465 = sand.u32 %s26, 1
          %s466 = scalar_lea.sflag [#allocation6], %s465
          %s467 = sand.u32 %s239, 1
          %s468 = smul.addr %s467, 128
          %s469 = scalar_lea.vmem [#allocation7], %s468
          %s471 = ssub.s32 2048, 2048
          %472 = vsyncadd %s466, %s471
          %s473 = smul.addr %s33, 16
          %s474 = smul.addr %s473, 128
          %s475 = scalar_lea.hbm %s7, %s474
          %s476 = sshll.u32 %s469, 4
          %s477 = int_to_ptr.vmem [resolvable:$true] %s476
          %482 = dma.hbm_to_vmem [thread:$0]  %s475, 2048, %s477, %s466, 128, 128, 8
        $region48: #{tpu_custom_call.1} parent=15 // pred_fallthru
          _
        // Predicated region
        $region49: #{tpu_custom_call.1} parent=15 // pred_check
          %p483 = pneg %p275
        $region50: #{tpu_custom_call.1} parent=15 // pred_check_branch
          %485 = sbr.rel (%p483) target = $region52
        $region51: #{tpu_custom_call.1} parent=15 // pred_region
          %p486 = scmp.lt.s32.totalorder %s33, 3
          %s487 = scalar_select %p486, %s33, 3
          %s488 = scalar_lea.vmem %s8, %s487
        $region52: #{tpu_custom_call.1} parent=15 // pred_fallthru
          _
        // Predicated region
        $region53: #{tpu_custom_call.1} parent=15 // pred_check
          %p489 = pneg %p301
        $region54: #{tpu_custom_call.1} parent=15 // pred_check_branch
          %491 = sbr.rel (%p489) target = $region56
        $region55: #{tpu_custom_call.1} parent=15 // pred_region
          %p492 = scmp.lt.s32.totalorder %s33, 3
          %s493 = scalar_select %p492, %s33, 3
          %s494 = smul.addr %s493, 8
          %s495 = scalar_lea.vmem %s9, %s494
        $region56: #{tpu_custom_call.1} parent=15 // pred_fallthru
          _
        // Predicated region
        $region57: #{tpu_custom_call.1} parent=15 // pred_check
          %p496 = pneg %p327
        $region58: #{tpu_custom_call.1} parent=15 // pred_check_branch
          %498 = sbr.rel (%p496) target = $region60
        $region59: #{tpu_custom_call.1} parent=15 // pred_region
          %p499 = scmp.lt.s32.totalorder %s33, 3
          %s500 = scalar_select %p499, %s33, 3
          %s501 = smul.addr %s500, 8
          %s502 = scalar_lea.vmem %s10, %s501
        $region60: #{tpu_custom_call.1} parent=15 // pred_fallthru
          _
      $region16: #{tpu_custom_call.1} parent=5 // pred_fallthru
        _
      %p503 = scmp.le.s32.totalorder 1, %s26
      %p504 = scmp.lt.s32.totalorder %s26, 9
      %p505 = pnand %p503, %p504
      %p506 = pneg %p505
      // Predicated region
      $region61: #{tpu_custom_call.1} parent=5 // pred_check
        _
      $region62: #{tpu_custom_call.1} parent=5 // pred_check_branch
        %508 = sbr.rel (%p505) target = $region64
      $region63: #{tpu_custom_call.1} parent=5 // pred_region
        %s509 = ssub.s32 %s26, 1
        %s510 = sand.u32 %s138, 1
        %s511 = scalar_lea.sflag [#allocation3], %s510
        %s512 = sand.u32 %s138, 1
        %s513 = smul.addr %s512, 128
        %s514 = scalar_lea.vmem [#allocation2], %s513
        // Predicated region
        $region65: #{tpu_custom_call.1} parent=63 // pred_check
          %p515 = pneg %p151
        $region66: #{tpu_custom_call.1} parent=63 // pred_check_branch
          %517 = sbr.rel (%p515) target = $region68
        $region67: #{tpu_custom_call.1} parent=63 // pred_region
          %518 = dma.done %s511, 2048
        $region68: #{tpu_custom_call.1} parent=63 // pred_fallthru
          _
        %s519 = sand.u32 %s31, 1
        %s520 = scalar_lea.sflag [#allocation6], %s519
        %s521 = sand.u32 %s190, 1
        %s522 = smul.addr %s521, 128
        %s523 = scalar_lea.vmem [#allocation5], %s522
        // Predicated region
        $region69: #{tpu_custom_call.1} parent=63 // pred_check
          %p524 = pneg %p203
        $region70: #{tpu_custom_call.1} parent=63 // pred_check_branch
          %526 = sbr.rel (%p524) target = $region72
        $region71: #{tpu_custom_call.1} parent=63 // pred_region
          %527 = dma.done %s520, 2048
        $region72: #{tpu_custom_call.1} parent=63 // pred_fallthru
          _
        %s528 = sand.u32 %s31, 1
        %s529 = scalar_lea.sflag [#allocation6], %s528
        %s530 = sand.u32 %s242, 1
        %s531 = smul.addr %s530, 128
        %s532 = scalar_lea.vmem [#allocation7], %s531
        // Predicated region
        $region73: #{tpu_custom_call.1} parent=63 // pred_check
          %p533 = pneg %p255
        $region74: #{tpu_custom_call.1} parent=63 // pred_check_branch
          %535 = sbr.rel (%p533) target = $region76
        $region75: #{tpu_custom_call.1} parent=63 // pred_region
          %536 = dma.done %s529, 2048
        $region76: #{tpu_custom_call.1} parent=63 // pred_fallthru
          _
        %p537 = scmp.lt.s32.totalorder %s37, 1
        %s538 = scalar_select %p537, %s37, 1
        %s539 = scalar_lea.vmem %s0, %s538
        %p540 = pneg %p71
        %p541 = pneg %p68
        %s542 = smul.u32 2, %s38
        %p543 = scmp.lt.s32.totalorder %s36, 3
        %s544 = scalar_select %p543, %s36, 3
        %p545 = scmp.lt.s32.totalorder %s542, 1
        %s546 = scalar_select %p545, %s542, 1
        %s547 = smul.addr %s544, 2
        %s548 = sadd.s32 %s546, %s547
        %s549 = smul.addr %s548, 8
        %s550 = scalar_lea.vmem %s1, %s549
        %p551 = pneg %p99
        %p552 = pneg %p96
        %p553 = scmp.lt.s32.totalorder %s36, 3
        %s554 = scalar_select %p553, %s36, 3
        %s555 = smul.addr %s554, 8
        %s556 = scalar_lea.vmem %s2, %s555
        %p557 = pneg %p125
        %p558 = pneg %p122
        %s559 = sand.u32 %s138, 1
        %s560 = scalar_lea.sflag [#allocation3], %s559
        %s561 = sand.u32 %s138, 1
        %s562 = smul.addr %s561, 128
        %s563 = scalar_lea.vmem [#allocation2], %s562
        %p564 = pneg %p151
        %p565 = pneg %p148
        %p566 = scmp.lt.s32.totalorder %s36, 3
        %s567 = scalar_select %p566, %s36, 3
        %s568 = scalar_lea.vmem %s4, %s567
        %p569 = pneg %p177
        %p570 = pneg %p174
        %s571 = sand.u32 %s31, 1
        %s572 = scalar_lea.sflag [#allocation6], %s571
        %s573 = sand.u32 %s190, 1
        %s574 = smul.addr %s573, 128
        %s575 = scalar_lea.vmem [#allocation5], %s574
        %p576 = pneg %p203
        %p577 = pneg %p200
        %p578 = scmp.lt.s32.totalorder %s36, 3
        %s579 = scalar_select %p578, %s36, 3
        %s580 = scalar_lea.vmem %s6, %s579
        %p581 = pneg %p229
        %p582 = pneg %p226
        %s583 = sand.u32 %s31, 1
        %s584 = scalar_lea.sflag [#allocation6], %s583
        %s585 = sand.u32 %s242, 1
        %s586 = smul.addr %s585, 128
        %s587 = scalar_lea.vmem [#allocation7], %s586
        %p588 = pneg %p255
        %p589 = pneg %p252
        %p590 = scmp.lt.s32.totalorder %s36, 3
        %s591 = scalar_select %p590, %s36, 3
        %s592 = scalar_lea.vmem %s8, %s591
        %p593 = pneg %p281
        %p594 = pneg %p278
        %p595 = scmp.lt.s32.totalorder %s36, 3
        %s596 = scalar_select %p595, %s36, 3
        %s597 = smul.addr %s596, 8
        %s598 = scalar_lea.vmem %s9, %s597
        %p599 = pneg %p307
        %p600 = pneg %p304
        %p601 = scmp.lt.s32.totalorder %s36, 3
        %s602 = scalar_select %p601, %s36, 3
        %s603 = smul.addr %s602, 8
        %s604 = scalar_lea.vmem %s10, %s603
        %p605 = pneg %p333
        %p606 = pneg %p330
        %p607 = pneg %p363
        %p608 = pneg %p360
        %s609 = sand.u32 %s350, 1
        %s610 = scalar_lea.sflag [#allocation4], %s609
        %s611 = sand.u32 %s350, 1
        %s612 = smul.addr %s611, 8
        %s613 = scalar_lea.vmem [#allocation8], %s612
        %p614 = scmp.lt.s32.totalorder %s37, 1
        %s615 = scalar_select %p614, %s37, 1
        %s616 = scalar_lea.vmem %s0, %s615
        %s617 = smul.u32 2, %s38
        %p618 = scmp.lt.s32.totalorder %s36, 3
        %s619 = scalar_select %p618, %s36, 3
        %p620 = scmp.lt.s32.totalorder %s617, 1
        %s621 = scalar_select %p620, %s617, 1
        %s622 = smul.addr %s619, 2
        %s623 = sadd.s32 %s621, %s622
        %s624 = smul.addr %s623, 8
        %s625 = scalar_lea.vmem %s1, %s624
        %s626 = smul.u32 2, %s38
        %p627 = scmp.lt.s32.totalorder %s36, 3
        %s628 = scalar_select %p627, %s36, 3
        %s629 = smul.addr %s628, 8
        %s630 = scalar_lea.vmem %s2, %s629
        %p631 = scmp.lt.s32.totalorder %s36, 3
        %s632 = scalar_select %p631, %s36, 3
        %s633 = scalar_lea.vmem %s4, %s632
        %p634 = scmp.lt.s32.totalorder %s36, 3
        %s635 = scalar_select %p634, %s36, 3
        %s636 = scalar_lea.vmem %s6, %s635
        %p637 = scmp.lt.s32.totalorder %s36, 3
        %s638 = scalar_select %p637, %s36, 3
        %s639 = scalar_lea.vmem %s8, %s638
        %p640 = scmp.lt.s32.totalorder %s36, 3
        %s641 = scalar_select %p640, %s36, 3
        %s642 = smul.addr %s641, 8
        %s643 = scalar_lea.vmem %s9, %s642
        %p644 = scmp.lt.s32.totalorder %s36, 3
        %s645 = scalar_select %p644, %s36, 3
        %s646 = smul.addr %s645, 8
        %s647 = scalar_lea.vmem %s10, %s646
        %v648 = vld [vmem:[%s616] sm:$0x1]
        %v649 = vld [vmem:[%s514] sm:$0xff]
        %v650 = vld [vmem:[%s514 + $0x8] sm:$0xff]
        %v651 = vld [vmem:[%s514 + $0x10] sm:$0xff]
        %v652 = vld [vmem:[%s514 + $0x18] sm:$0xff]
        %v653 = vld [vmem:[%s514 + $0x20] sm:$0xff]
        %v654 = vld [vmem:[%s514 + $0x28] sm:$0xff]
        %v655 = vld [vmem:[%s514 + $0x30] sm:$0xff]
        %v656 = vld [vmem:[%s514 + $0x38] sm:$0xff]
        %v657 = vld [vmem:[%s514 + $0x40] sm:$0xff]
        %v658 = vld [vmem:[%s514 + $0x48] sm:$0xff]
        %v659 = vld [vmem:[%s514 + $0x50] sm:$0xff]
        %v660 = vld [vmem:[%s514 + $0x58] sm:$0xff]
        %v661 = vld [vmem:[%s514 + $0x60] sm:$0xff]
        %v662 = vld [vmem:[%s514 + $0x68] sm:$0xff]
        %v663 = vld [vmem:[%s514 + $0x70] sm:$0xff]
        %v664 = vld [vmem:[%s514 + $0x78] sm:$0xff]
        %665 = vmatprep.subr.mxu0 0.0
        %666 = vmatpush1.msra.mxu0 %v664
        %667 = vmatprep.subr.mxu0 0.0
        %668 = vmatpush1.msra.mxu0 %v663
        %669 = vmatprep.subr.mxu0 0.0
        %670 = vmatpush1.msra.mxu0 %v662
        %671 = vmatprep.subr.mxu0 0.0
        %672 = vmatpush1.msra.mxu0 %v661
        %673 = vmatprep.subr.mxu0 0.0
        %674 = vmatpush1.msra.mxu0 %v660
        %675 = vmatprep.subr.mxu0 0.0
        %676 = vmatpush1.msra.mxu0 %v659
        %677 = vmatprep.subr.mxu0 0.0
        %678 = vmatpush1.msra.mxu0 %v658
        %679 = vmatprep.subr.mxu0 0.0
        %680 = vmatpush1.msra.mxu0 %v657
        %681 = vmatprep.subr.mxu0 0.0
        %682 = vmatpush1.msra.mxu0 %v656
        %683 = vmatprep.subr.mxu0 0.0
        %684 = vmatpush1.msra.mxu0 %v655
        %685 = vmatprep.subr.mxu0 0.0
        %686 = vmatpush1.msra.mxu0 %v654
        %687 = vmatprep.subr.mxu0 0.0
        %688 = vmatpush1.msra.mxu0 %v653
        %689 = vmatprep.subr.mxu0 0.0
        %690 = vmatpush1.msra.mxu0 %v652
        %691 = vmatprep.subr.mxu0 0.0
        %692 = vmatpush1.msra.mxu0 %v651
        %693 = vmatprep.subr.mxu0 0.0
        %694 = vmatpush1.msra.mxu0 %v650
        %695 = vmatprep.subr.mxu0 0.0
        %696 = vmatpush1.msra.mxu0 %v649
        %697 = vmatprep.subr.mxu0 0.0
        %698 = vmatpush2.msra.mxu0 0.0
        %699 = vmatprep.subr.mxu0 0.0
        %700 = vmatpush2.msra.mxu0 0.0
        %701 = vmatprep.subr.mxu0 0.0
        %702 = vmatpush2.msra.mxu0 0.0
        %703 = vmatprep.subr.mxu0 0.0
        %704 = vmatpush2.msra.mxu0 0.0
        %705 = vmatprep.subr.mxu0 0.0
        %706 = vmatpush2.msra.mxu0 0.0
        %707 = vmatprep.subr.mxu0 0.0
        %708 = vmatpush2.msra.mxu0 0.0
        %709 = vmatprep.subr.mxu0 0.0
        %710 = vmatpush2.msra.mxu0 0.0
        %711 = vmatprep.subr.mxu0 0.0
        %712 = vmatpush2.msra.mxu0 0.0
        %713 = vmatprep.subr.mxu0 0.0
        %714 = vmatpush2.msra.mxu0 0.0
        %715 = vmatprep.subr.mxu0 0.0
        %716 = vmatpush2.msra.mxu0 0.0
        %717 = vmatprep.subr.mxu0 0.0
        %718 = vmatpush2.msra.mxu0 0.0
        %719 = vmatprep.subr.mxu0 0.0
        %720 = vmatpush2.msra.mxu0 0.0
        %721 = vmatprep.subr.mxu0 0.0
        %722 = vmatpush2.msra.mxu0 0.0
        %723 = vmatprep.subr.mxu0 0.0
        %724 = vmatpush2.msra.mxu0 0.0
        %725 = vmatprep.subr.mxu0 0.0
        %726 = vmatpush2.msra.mxu0 0.0
        %727 = vmatprep.subr.mxu0 0.0
        %728 = vmatpush2.msra.mxu0 0.0
        %729 = vmatprep.mubr.f32.mxu0 0.0
        %730 = vmatmul.mubr.f32.gmra.mxu0 %v648
        %v731 = vpop.f32.mrf.mxu0
        %v732 = vadd.f32 0.0, %v731
        %v733 = vpop.f32.mrf.mxu0
        %734 = vdwg.mxu0
        %v735 = vld [vmem:[%s625] sm:$0xff]
        %v736 = vld [vmem:[%s625 + $0x8] sm:$0xff]
        %v737 = vld [vmem:[%s630] sm:$0xff]
        %v738 = vlaneseq
        %v739 = vshrl.u32 %v738, 7
        %v740 = vsub.s32 0, %v739
        %v741 = vrot.slane %v732, %v740
        %vm742 = vcmask 64512
        %v744 = vsel %vm742, %v735, 0
        %v747 = vsel %vm742, %v736, 0
        %749 = vmatprep.subr.mxu0 0.0
        %750 = vmatpush1.msra.mxu0 0.0
        %751 = vmatprep.subr.mxu0 0.0
        %752 = vmatpush1.msra.mxu0 0.0
        %753 = vmatprep.subr.mxu0 0.0
        %754 = vmatpush1.msra.mxu0 0.0
        %755 = vmatprep.subr.mxu0 0.0
        %756 = vmatpush1.msra.mxu0 0.0
        %757 = vmatprep.subr.mxu0 0.0
        %758 = vmatpush1.msra.mxu0 0.0
        %759 = vmatprep.subr.mxu0 0.0
        %760 = vmatpush1.msra.mxu0 0.0
        %761 = vmatprep.subr.mxu0 0.0
        %762 = vmatpush1.msra.mxu0 0.0
        %763 = vmatprep.subr.mxu0 0.0
        %764 = vmatpush1.msra.mxu0 0.0
        %765 = vmatprep.subr.mxu0 0.0
        %766 = vmatpush1.msra.mxu0 0.0
        %767 = vmatprep.subr.mxu0 0.0
        %768 = vmatpush1.msra.mxu0 0.0
        %769 = vmatprep.subr.mxu0 0.0
        %770 = vmatpush1.msra.mxu0 0.0
        %771 = vmatprep.subr.mxu0 0.0
        %772 = vmatpush1.msra.mxu0 0.0
        %773 = vmatprep.subr.mxu0 0.0
        %774 = vmatpush1.msra.mxu0 0.0
        %775 = vmatprep.subr.mxu0 0.0
        %776 = vmatpush1.msra.mxu0 0.0
        %777 = vmatprep.subr.mxu0 0.0
        %778 = vmatpush1.msra.mxu0 0.0
        %779 = vmatprep.subr.mxu0 0.0
        %780 = vmatpush1.msra.mxu0 %v737
        %781 = vmatprep.subr.mxu0 0.0
        %782 = vmatpush2.msra.mxu0 0.0
        %783 = vmatprep.subr.mxu0 0.0
        %784 = vmatpush2.msra.mxu0 0.0
        %785 = vmatprep.subr.mxu0 0.0
        %786 = vmatpush2.msra.mxu0 0.0
        %787 = vmatprep.subr.mxu0 0.0
        %788 = vmatpush2.msra.mxu0 0.0
        %789 = vmatprep.subr.mxu0 0.0
        %790 = vmatpush2.msra.mxu0 0.0
        %791 = vmatprep.subr.mxu0 0.0
        %792 = vmatpush2.msra.mxu0 0.0
        %793 = vmatprep.subr.mxu0 0.0
        %794 = vmatpush2.msra.mxu0 0.0
        %795 = vmatprep.subr.mxu0 0.0
        %796 = vmatpush2.msra.mxu0 0.0
        %797 = vmatprep.subr.mxu0 0.0
        %798 = vmatpush2.msra.mxu0 0.0
        %799 = vmatprep.subr.mxu0 0.0
        %800 = vmatpush2.msra.mxu0 0.0
        %801 = vmatprep.subr.mxu0 0.0
        %802 = vmatpush2.msra.mxu0 0.0
        %803 = vmatprep.subr.mxu0 0.0
        %804 = vmatpush2.msra.mxu0 0.0
        %805 = vmatprep.subr.mxu0 0.0
        %806 = vmatpush2.msra.mxu0 0.0
        %807 = vmatprep.subr.mxu0 0.0
        %808 = vmatpush2.msra.mxu0 0.0
        %809 = vmatprep.subr.mxu0 0.0
        %810 = vmatpush2.msra.mxu0 0.0
        %811 = vmatprep.subr.mxu0 0.0
        %812 = vmatpush2.msra.mxu0 0.0
        %813 = vmatprep.mubr.f32.mxu0 0.0
        %814 = vmatmul.mubr.f32.gmra.mxu0 %v744
        %v815 = vpop.f32.mrf.mxu0
        %v816 = vadd.f32 %v741, %v815
        %v817 = vpop.f32.mrf.mxu0
        %818 = vmatprep.mubr.f32.mxu0 0.0
        %819 = vmatmul.mubr.f32.gmra.mxu0 %v747
        %v820 = vpop.f32.mrf.mxu0
        %v821 = vadd.f32 %v741, %v820
        %v822 = vpop.f32.mrf.mxu0
        %823 = vdwg.mxu0
        %v824 = vld [vmem:[%s633] sm:$0x1]
        %v826 = vlaneseq
        %v827 = vshrl.u32 %v826, 7
        %v828 = vsub.s32 0, %v827
        %v829 = vrot.slane %v824, %v828
        %v831 = vadd.f32 %v816, %v829
        %v832 = vadd.f32 %v821, %v829
        %v833 = vmax.f32 %v831, 0.0
        %v834 = vmax.f32 %v832, 0.0
        %v835 = vld [vmem:[%s523] sm:$0xff]
        %v836 = vld [vmem:[%s523 + $0x8] sm:$0xff]
        %v837 = vld [vmem:[%s523 + $0x10] sm:$0xff]
        %v838 = vld [vmem:[%s523 + $0x18] sm:$0xff]
        %v839 = vld [vmem:[%s523 + $0x20] sm:$0xff]
        %v840 = vld [vmem:[%s523 + $0x28] sm:$0xff]
        %v841 = vld [vmem:[%s523 + $0x30] sm:$0xff]
        %v842 = vld [vmem:[%s523 + $0x38] sm:$0xff]
        %v843 = vld [vmem:[%s523 + $0x40] sm:$0xff]
        %v844 = vld [vmem:[%s523 + $0x48] sm:$0xff]
        %v845 = vld [vmem:[%s523 + $0x50] sm:$0xff]
        %v846 = vld [vmem:[%s523 + $0x58] sm:$0xff]
        %v847 = vld [vmem:[%s523 + $0x60] sm:$0xff]
        %v848 = vld [vmem:[%s523 + $0x68] sm:$0xff]
        %v849 = vld [vmem:[%s523 + $0x70] sm:$0xff]
        %v850 = vld [vmem:[%s523 + $0x78] sm:$0xff]
        %v851 = vld [vmem:[%s636] sm:$0x1]
        %v853 = vlaneseq
        %v854 = vshrl.u32 %v853, 7
        %v855 = vsub.s32 0, %v854
        %v856 = vrot.slane %v851, %v855
        %858 = vmatprep.subr.mxu0 0.0
        %859 = vmatpush1.msra.mxu0 %v850
        %860 = vmatprep.subr.mxu0 0.0
        %861 = vmatpush1.msra.mxu0 %v849
        %862 = vmatprep.subr.mxu0 0.0
        %863 = vmatpush1.msra.mxu0 %v848
        %864 = vmatprep.subr.mxu0 0.0
        %865 = vmatpush1.msra.mxu0 %v847
        %866 = vmatprep.subr.mxu0 0.0
        %867 = vmatpush1.msra.mxu0 %v846
        %868 = vmatprep.subr.mxu0 0.0
        %869 = vmatpush1.msra.mxu0 %v845
        %870 = vmatprep.subr.mxu0 0.0
        %871 = vmatpush1.msra.mxu0 %v844
        %872 = vmatprep.subr.mxu0 0.0
        %873 = vmatpush1.msra.mxu0 %v843
        %874 = vmatprep.subr.mxu0 0.0
        %875 = vmatpush1.msra.mxu0 %v842
        %876 = vmatprep.subr.mxu0 0.0
        %877 = vmatpush1.msra.mxu0 %v841
        %878 = vmatprep.subr.mxu0 0.0
        %879 = vmatpush1.msra.mxu0 %v840
        %880 = vmatprep.subr.mxu0 0.0
        %881 = vmatpush1.msra.mxu0 %v839
        %882 = vmatprep.subr.mxu0 0.0
        %883 = vmatpush1.msra.mxu0 %v838
        %884 = vmatprep.subr.mxu0 0.0
        %885 = vmatpush1.msra.mxu0 %v837
        %886 = vmatprep.subr.mxu0 0.0
        %887 = vmatpush1.msra.mxu0 %v836
        %888 = vmatprep.subr.mxu0 0.0
        %889 = vmatpush1.msra.mxu0 %v835
        %890 = vmatprep.subr.mxu0 0.0
        %891 = vmatpush2.msra.mxu0 0.0
        %892 = vmatprep.subr.mxu0 0.0
        %893 = vmatpush2.msra.mxu0 0.0
        %894 = vmatprep.subr.mxu0 0.0
        %895 = vmatpush2.msra.mxu0 0.0
        %896 = vmatprep.subr.mxu0 0.0
        %897 = vmatpush2.msra.mxu0 0.0
        %898 = vmatprep.subr.mxu0 0.0
        %899 = vmatpush2.msra.mxu0 0.0
        %900 = vmatprep.subr.mxu0 0.0
        %901 = vmatpush2.msra.mxu0 0.0
        %902 = vmatprep.subr.mxu0 0.0
        %903 = vmatpush2.msra.mxu0 0.0
        %904 = vmatprep.subr.mxu0 0.0
        %905 = vmatpush2.msra.mxu0 0.0
        %906 = vmatprep.subr.mxu0 0.0
        %907 = vmatpush2.msra.mxu0 0.0
        %908 = vmatprep.subr.mxu0 0.0
        %909 = vmatpush2.msra.mxu0 0.0
        %910 = vmatprep.subr.mxu0 0.0
        %911 = vmatpush2.msra.mxu0 0.0
        %912 = vmatprep.subr.mxu0 0.0
        %913 = vmatpush2.msra.mxu0 0.0
        %914 = vmatprep.subr.mxu0 0.0
        %915 = vmatpush2.msra.mxu0 0.0
        %916 = vmatprep.subr.mxu0 0.0
        %917 = vmatpush2.msra.mxu0 0.0
        %918 = vmatprep.subr.mxu0 0.0
        %919 = vmatpush2.msra.mxu0 0.0
        %920 = vmatprep.subr.mxu0 0.0
        %921 = vmatpush2.msra.mxu0 0.0
        %922 = vmatprep.mubr.f32.mxu0 0.0
        %923 = vmatmul.mubr.f32.gmra.mxu0 %v833
        %v924 = vpop.f32.mrf.mxu0
        %v925 = vadd.f32 %v856, %v924
        %v926 = vpop.f32.mrf.mxu0
        %927 = vmatprep.mubr.f32.mxu0 0.0
        %928 = vmatmul.mubr.f32.gmra.mxu0 %v834
        %v929 = vpop.f32.mrf.mxu0
        %v930 = vadd.f32 %v856, %v929
        %v931 = vpop.f32.mrf.mxu0
        %932 = vdwg.mxu0
        %v933 = vmax.f32 %v925, 0.0
        %v934 = vmax.f32 %v930, 0.0
        %v935 = vld [vmem:[%s532] sm:$0xff]
        %v936 = vld [vmem:[%s532 + $0x8] sm:$0xff]
        %v937 = vld [vmem:[%s532 + $0x10] sm:$0xff]
        %v938 = vld [vmem:[%s532 + $0x18] sm:$0xff]
        %v939 = vld [vmem:[%s532 + $0x20] sm:$0xff]
        %v940 = vld [vmem:[%s532 + $0x28] sm:$0xff]
        %v941 = vld [vmem:[%s532 + $0x30] sm:$0xff]
        %v942 = vld [vmem:[%s532 + $0x38] sm:$0xff]
        %v943 = vld [vmem:[%s532 + $0x40] sm:$0xff]
        %v944 = vld [vmem:[%s532 + $0x48] sm:$0xff]
        %v945 = vld [vmem:[%s532 + $0x50] sm:$0xff]
        %v946 = vld [vmem:[%s532 + $0x58] sm:$0xff]
        %v947 = vld [vmem:[%s532 + $0x60] sm:$0xff]
        %v948 = vld [vmem:[%s532 + $0x68] sm:$0xff]
        %v949 = vld [vmem:[%s532 + $0x70] sm:$0xff]
        %v950 = vld [vmem:[%s532 + $0x78] sm:$0xff]
        %v951 = vld [vmem:[%s639] sm:$0x1]
        %v953 = vlaneseq
        %v954 = vshrl.u32 %v953, 7
        %v955 = vsub.s32 0, %v954
        %v956 = vrot.slane %v951, %v955
        %958 = vmatprep.subr.mxu0 0.0
        %959 = vmatpush1.msra.mxu0 %v950
        %960 = vmatprep.subr.mxu0 0.0
        %961 = vmatpush1.msra.mxu0 %v949
        %962 = vmatprep.subr.mxu0 0.0
        %963 = vmatpush1.msra.mxu0 %v948
        %964 = vmatprep.subr.mxu0 0.0
        %965 = vmatpush1.msra.mxu0 %v947
        %966 = vmatprep.subr.mxu0 0.0
        %967 = vmatpush1.msra.mxu0 %v946
        %968 = vmatprep.subr.mxu0 0.0
        %969 = vmatpush1.msra.mxu0 %v945
        %970 = vmatprep.subr.mxu0 0.0
        %971 = vmatpush1.msra.mxu0 %v944
        %972 = vmatprep.subr.mxu0 0.0
        %973 = vmatpush1.msra.mxu0 %v943
        %974 = vmatprep.subr.mxu0 0.0
        %975 = vmatpush1.msra.mxu0 %v942
        %976 = vmatprep.subr.mxu0 0.0
        %977 = vmatpush1.msra.mxu0 %v941
        %978 = vmatprep.subr.mxu0 0.0
        %979 = vmatpush1.msra.mxu0 %v940
        %980 = vmatprep.subr.mxu0 0.0
        %981 = vmatpush1.msra.mxu0 %v939
        %982 = vmatprep.subr.mxu0 0.0
        %983 = vmatpush1.msra.mxu0 %v938
        %984 = vmatprep.subr.mxu0 0.0
        %985 = vmatpush1.msra.mxu0 %v937
        %986 = vmatprep.subr.mxu0 0.0
        %987 = vmatpush1.msra.mxu0 %v936
        %988 = vmatprep.subr.mxu0 0.0
        %989 = vmatpush1.msra.mxu0 %v935
        %990 = vmatprep.subr.mxu0 0.0
        %991 = vmatpush2.msra.mxu0 0.0
        %992 = vmatprep.subr.mxu0 0.0
        %993 = vmatpush2.msra.mxu0 0.0
        %994 = vmatprep.subr.mxu0 0.0
        %995 = vmatpush2.msra.mxu0 0.0
        %996 = vmatprep.subr.mxu0 0.0
        %997 = vmatpush2.msra.mxu0 0.0
        %998 = vmatprep.subr.mxu0 0.0
        %999 = vmatpush2.msra.mxu0 0.0
        %1000 = vmatprep.subr.mxu0 0.0
        %1001 = vmatpush2.msra.mxu0 0.0
        %1002 = vmatprep.subr.mxu0 0.0
        %1003 = vmatpush2.msra.mxu0 0.0
        %1004 = vmatprep.subr.mxu0 0.0
        %1005 = vmatpush2.msra.mxu0 0.0
        %1006 = vmatprep.subr.mxu0 0.0
        %1007 = vmatpush2.msra.mxu0 0.0
        %1008 = vmatprep.subr.mxu0 0.0
        %1009 = vmatpush2.msra.mxu0 0.0
        %1010 = vmatprep.subr.mxu0 0.0
        %1011 = vmatpush2.msra.mxu0 0.0
        %1012 = vmatprep.subr.mxu0 0.0
        %1013 = vmatpush2.msra.mxu0 0.0
        %1014 = vmatprep.subr.mxu0 0.0
        %1015 = vmatpush2.msra.mxu0 0.0
        %1016 = vmatprep.subr.mxu0 0.0
        %1017 = vmatpush2.msra.mxu0 0.0
        %1018 = vmatprep.subr.mxu0 0.0
        %1019 = vmatpush2.msra.mxu0 0.0
        %1020 = vmatprep.subr.mxu0 0.0
        %1021 = vmatpush2.msra.mxu0 0.0
        %1022 = vmatprep.mubr.f32.mxu0 0.0
        %1023 = vmatmul.mubr.f32.gmra.mxu0 %v933
        %v1024 = vpop.f32.mrf.mxu0
        %v1025 = vadd.f32 %v956, %v1024
        %v1026 = vpop.f32.mrf.mxu0
        %1027 = vmatprep.mubr.f32.mxu0 0.0
        %1028 = vmatmul.mubr.f32.gmra.mxu0 %v934
        %v1029 = vpop.f32.mrf.mxu0
        %v1030 = vadd.f32 %v956, %v1029
        %v1031 = vpop.f32.mrf.mxu0
        %1032 = vdwg.mxu0
        %v1033 = vmax.f32 %v1025, 0.0
        %v1034 = vmax.f32 %v1030, 0.0
        %v1035 = vld [vmem:[%s643] sm:$0xff]
        %v1036 = vld [vmem:[%s647] sm:$0xff]
        %1038 = vset.pattern.permute.xlu0 0
        %1039 = vperm.xlu0 %1038, %v1036
        %v1040 = vpop.permute.xlu0 %1039
        %1042 = vmatprep.subr.mxu0 0.0
        %1043 = vmatpush1.xpose.msra.mxu0 0.0
        %1044 = vmatprep.subr.mxu0 0.0
        %1045 = vmatpush1.xpose.msra.mxu0 0.0
        %1046 = vmatprep.subr.mxu0 0.0
        %1047 = vmatpush1.xpose.msra.mxu0 0.0
        %1048 = vmatprep.subr.mxu0 0.0
        %1049 = vmatpush1.xpose.msra.mxu0 0.0
        %1050 = vmatprep.subr.mxu0 0.0
        %1051 = vmatpush1.xpose.msra.mxu0 0.0
        %1052 = vmatprep.subr.mxu0 0.0
        %1053 = vmatpush1.xpose.msra.mxu0 0.0
        %1054 = vmatprep.subr.mxu0 0.0
        %1055 = vmatpush1.xpose.msra.mxu0 0.0
        %1056 = vmatprep.subr.mxu0 0.0
        %1057 = vmatpush1.xpose.msra.mxu0 0.0
        %1058 = vmatprep.subr.mxu0 0.0
        %1059 = vmatpush1.xpose.msra.mxu0 0.0
        %1060 = vmatprep.subr.mxu0 0.0
        %1061 = vmatpush1.xpose.msra.mxu0 0.0
        %1062 = vmatprep.subr.mxu0 0.0
        %1063 = vmatpush1.xpose.msra.mxu0 0.0
        %1064 = vmatprep.subr.mxu0 0.0
        %1065 = vmatpush1.xpose.msra.mxu0 0.0
        %1066 = vmatprep.subr.mxu0 0.0
        %1067 = vmatpush1.xpose.msra.mxu0 0.0
        %1068 = vmatprep.subr.mxu0 0.0
        %1069 = vmatpush1.xpose.msra.mxu0 0.0
        %1070 = vmatprep.subr.mxu0 0.0
        %1071 = vmatpush1.xpose.msra.mxu0 %v1034
        %1072 = vmatprep.subr.mxu0 0.0
        %1073 = vmatpush1.xpose.msra.mxu0 %v1033
        %1074 = vmatprep.subr.mxu0 0.0
        %1075 = vmatpush2.xpose.msra.mxu0 0.0
        %1076 = vmatprep.subr.mxu0 0.0
        %1077 = vmatpush2.xpose.msra.mxu0 0.0
        %1078 = vmatprep.subr.mxu0 0.0
        %1079 = vmatpush2.xpose.msra.mxu0 0.0
        %1080 = vmatprep.subr.mxu0 0.0
        %1081 = vmatpush2.xpose.msra.mxu0 0.0
        %1082 = vmatprep.subr.mxu0 0.0
        %1083 = vmatpush2.xpose.msra.mxu0 0.0
        %1084 = vmatprep.subr.mxu0 0.0
        %1085 = vmatpush2.xpose.msra.mxu0 0.0
        %1086 = vmatprep.subr.mxu0 0.0
        %1087 = vmatpush2.xpose.msra.mxu0 0.0
        %1088 = vmatprep.subr.mxu0 0.0
        %1089 = vmatpush2.xpose.msra.mxu0 0.0
        %1090 = vmatprep.subr.mxu0 0.0
        %1091 = vmatpush2.xpose.msra.mxu0 0.0
        %1092 = vmatprep.subr.mxu0 0.0
        %1093 = vmatpush2.xpose.msra.mxu0 0.0
        %1094 = vmatprep.subr.mxu0 0.0
        %1095 = vmatpush2.xpose.msra.mxu0 0.0
        %1096 = vmatprep.subr.mxu0 0.0
        %1097 = vmatpush2.xpose.msra.mxu0 0.0
        %1098 = vmatprep.subr.mxu0 0.0
        %1099 = vmatpush2.xpose.msra.mxu0 0.0
        %1100 = vmatprep.subr.mxu0 0.0
        %1101 = vmatpush2.xpose.msra.mxu0 0.0
        %1102 = vmatprep.subr.mxu0 0.0
        %1103 = vmatpush2.xpose.msra.mxu0 0.0
        %1104 = vmatprep.subr.mxu0 0.0
        %1105 = vmatpush2.xpose.msra.mxu0 0.0
        %1106 = vmatprep.mubr.f32.mxu0 0.0
        %1107 = vmatmul.mubr.f32.gmra.mxu0 %v1035
        %v1108 = vpop.f32.mrf.mxu0
        %v1109 = vadd.f32 %v1040, %v1108
        %v1110 = vpop.f32.mrf.mxu0
        %1111 = vdwg.mxu0
        %v1112 = vtanh.pop %v1109
        %vm1113 = vcmask 130048
        %1114 = vst.msk [vmem:[%s613] sm:$0xff] %vm1113, %v1112
        %s1115 = sand.u32 %s350, 1
        %s1116 = scalar_lea.sflag [#allocation4], %s1115
        %s1117 = sand.u32 %s350, 1
        %s1118 = smul.addr %s1117, 8
        %s1119 = scalar_lea.vmem [#allocation8], %s1118
        // Predicated region
        $region77: #{tpu_custom_call.1} parent=63 // pred_check
          %p1120 = pneg %p360
        $region78: #{tpu_custom_call.1} parent=63 // pred_check_branch
          %1122 = sbr.rel (%p1120) target = $region80
        $region79: #{tpu_custom_call.1} parent=63 // pred_region
          %s1124 = ssub.s32 128, 128
          %1125 = vsyncadd %s1116, %s1124
          %s1126 = sadd.s32 %s38, %s37
          %s1127 = smul.addr %s36, 2
          %s1128 = sadd.s32 %s1126, %s1127
          %s1129 = smul.addr %s1128, 128
          %s1130 = scalar_lea.hbm %s11, %s1129
          %s1132 = sshll.u32 %s1119, 4
          %s1133 = int_to_ptr.vmem [resolvable:$true] %s1132
          %1135 = dma.vmem_to_hbm [thread:$0]  %s1133, 128, %s1130, %s1116
        $region80: #{tpu_custom_call.1} parent=63 // pred_fallthru
          _
      $region64: #{tpu_custom_call.1} parent=5 // pred_fallthru
        _
      %p1136 = scmp.le.s32.totalorder 2, %s26
      // Predicated region
      $region81: #{tpu_custom_call.1} parent=5 // pred_check
        %p1137 = pneg %p1136
      $region82: #{tpu_custom_call.1} parent=5 // pred_check_branch
        %1139 = sbr.rel (%p1137) target = $region84
      $region83: #{tpu_custom_call.1} parent=5 // pred_region
        %s1140 = ssub.s32 %s26, 2
        // Predicated region
        $region85: #{tpu_custom_call.1} parent=83 // pred_check
          %p1141 = pneg %p366
        $region86: #{tpu_custom_call.1} parent=83 // pred_check_branch
          %1143 = sbr.rel (%p1141) target = $region88
        $region87: #{tpu_custom_call.1} parent=83 // pred_region
          %s1144 = sand.u32 %s351, 1
          %s1145 = scalar_lea.sflag [#allocation4], %s1144
          %s1146 = sand.u32 %s351, 1
          %s1147 = smul.addr %s1146, 8
          %s1148 = scalar_lea.vmem [#allocation8], %s1147
          %1149 = dma.done %s1145, 128
        $region88: #{tpu_custom_call.1} parent=83 // pred_fallthru
          _
      $region84: #{tpu_custom_call.1} parent=5 // pred_fallthru
        _
    $region6: #{tpu_custom_call.1} parent=1 // loop_footer
      %s30 = sadd.s32 1, %s26
    $region7: #{tpu_custom_call.1} parent=1 // loop_footer_branch
      %25 = sbr.rel target = $region3
    $region8: #{tpu_custom_call.1} parent=1 // loop_exit
      _
    %1150 = vsyncpa [#allocation3], 1
    %s1151 = scalar_lea.sflag [#allocation3], 1
    %1152 = vsyncpa %s1151, 1
    %1153 = vsyncpa [#allocation6], 1
    %s1154 = scalar_lea.sflag [#allocation6], 1
    %1155 = vsyncpa %s1154, 1
    %1156 = vsyncpa [#allocation4], 1
    %s1157 = scalar_lea.sflag [#allocation4], 1
    %1158 = vsyncpa %s1157, 1

</llo_original>
